<compile_context>
chip_gen: v7x
topology: tpu7x:2x2x1
jax: 0.10.0
libtpu: 0.0.40
codegen_flags: <defaults>
</compile_context>

<pallas_src>
import functools

import jax
import jax.numpy as jnp
from jax.experimental import pallas as pl
from jax.experimental.pallas import tpu as pltpu

LANE = 128          # TPU vreg lane width (last dim)
BF16_SUBLANE = 16   # bf16 packs 2 rows/sublane -> native (16, 128) batch tiles


def _round_up(n, m):
    return ((n + m - 1) // m) * m


def mlp_kernel(x_ref, w0_ref, b0_ref, w1_ref, b1_ref, w2_ref, b2_ref, o_ref):
    # Fused MLP hot path on the current batch tile:
    # 3 MXU matmuls (bf16 operands, f32 accumulation) + f32 bias adds + 2 ReLUs.
    x = x_ref[...]                                                  # bf16 [tb, in_p]

    h0 = jnp.dot(x, w0_ref[...], preferred_element_type=jnp.float32) + b0_ref[...]
    h0 = jnp.maximum(h0, 0.0)                                       # ReLU

    # Dropout(p=0.1) -> identity in eval / inference mode.

    h1 = jnp.dot(h0.astype(jnp.bfloat16), w1_ref[...],
                 preferred_element_type=jnp.float32) + b1_ref[...]
    h1 = jnp.maximum(h1, 0.0)                                       # ReLU

    out = jnp.dot(h1.astype(jnp.bfloat16), w2_ref[...],
                  preferred_element_type=jnp.float32) + b2_ref[...]
    o_ref[...] = out          # lane-dense (multiple-of-128) unmasked f32 store


def prepare_params(params, *, lane_multiple=LANE):
    """One-time layout plumbing (hoisted out of the per-call forward path):
    zero-pad every feature dim to `lane_multiple` and cast weights to bf16.
    Pad rows/columns are exact zeros -> numerics unchanged.
    Returns (padded_param_arrays, (input_dim, hidden_dim, num_classes))."""
    w0, b0, w1, b1, w2, b2 = params
    input_dim, hidden_dim = w0.shape
    num_classes = w2.shape[1]

    in_p = _round_up(input_dim, lane_multiple)
    hid_p = _round_up(hidden_dim, lane_multiple)
    out_p = _round_up(num_classes, lane_multiple)

    f32, bf16 = jnp.float32, jnp.bfloat16
    w0p = jnp.zeros((in_p, hid_p), f32).at[:input_dim, :hidden_dim].set(w0).astype(bf16)
    w1p = jnp.zeros((hid_p, hid_p), f32).at[:hidden_dim, :hidden_dim].set(w1).astype(bf16)
    w2p = jnp.zeros((hid_p, out_p), f32).at[:hidden_dim, :num_classes].set(w2).astype(bf16)
    b0p = jnp.zeros((1, hid_p), f32).at[:, :hidden_dim].set(b0)
    b1p = jnp.zeros((1, hid_p), f32).at[:, :hidden_dim].set(b1)
    b2p = jnp.zeros((1, out_p), f32).at[:, :num_classes].set(b2)

    padded = (w0p, b0p, w1p, b1p, w2p, b2p)
    dims = (int(input_dim), int(hidden_dim), int(num_classes))
    return padded, dims


def _default_tile_b(B):
    # Tiny batch: one grid step (per-step overhead ~0.35 us would dominate).
    # Larger batch: cap the tile at 256 rows so >=2 "parallel" grid steps exist
    # -> BlockSpec pipelining overlaps x(i+1)/out(i-1) DMA with compute(i), the
    # batch axis shards across v7x's 2 TensorCores, and per-step VMEM footprint
    # stays well under v7x's 64 MiB scoped VMEM.
    if B <= 256:
        return _round_up(B, BF16_SUBLANE)
    return 256


@functools.partial(jax.jit, static_argnames=("dims", "tile_b"))
def mlp_forward(x, padded_params, *, dims, tile_b=None):
    """Run the fused MLP Pallas kernel.

    x: [B, input_dim] (any float dtype; cast to f32 per the module's X.float()).
    padded_params, dims: output of prepare_params (padding/cast done once).
    """
    w0p, b0p, w1p, b1p, w2p, b2p = padded_params
    input_dim, hidden_dim, num_classes = dims
    B = x.shape[0]
    in_p, hid_p = w0p.shape
    out_p = w2p.shape[1]

    if tile_b is None:
        tile_b = _default_tile_b(B)
    tile_b = _round_up(tile_b, BF16_SUBLANE)   # bf16-native (16,128) batch tiles
    b_p = _round_up(B, tile_b)

    # x.float() per the module, zero-pad (exact), bf16 for the MXU.  With
    # allow_input_fusion on this operand, XLA fuses the pad/convert into the
    # pallas_call input stream (no separate padded-x HBM round trip).
    xp = (jnp.zeros((b_p, in_p), jnp.float32)
          .at[:B, :input_dim].set(x.astype(jnp.float32))
          .astype(jnp.bfloat16))

    grid = (b_p // tile_b,)
    const = lambda shape: pl.BlockSpec(shape, lambda i: (0, 0))  # grid-invariant block

    out_padded = pl.pallas_call(
        mlp_kernel,
        out_shape=jax.ShapeDtypeStruct((b_p, out_p), jnp.float32),
        grid_spec=pltpu.PrefetchScalarGridSpec(
            num_scalar_prefetch=0,
            grid=grid,
            in_specs=[
                pl.BlockSpec((tile_b, in_p), lambda i: (i, 0)),   # x tile
                const((in_p, hid_p)),                             # W0 (resident)
                const((1, hid_p)),                                # b0
                const((hid_p, hid_p)),                            # W1 (resident)
                const((1, hid_p)),                                # b1
                const((hid_p, out_p)),                            # W2 (resident)
                const((1, out_p)),                                # b2
            ],
            out_specs=pl.BlockSpec((tile_b, out_p), lambda i: (i, 0)),
        ),
        compiler_params=pltpu.CompilerParams(
            dimension_semantics=("parallel",),
            # Only the x operand (index 0) may have its producer fused in.
            allow_input_fusion=[True, False, False, False, False, False, False],
        ),
    )(xp, w0p, b0p, w1p, b1p, w2p, b2p)

    return out_padded[:B, :num_classes]


def init_params(key, input_dim, hidden_dim, num_classes):
    """Deterministic init mimicking nn.Linear's U(-1/sqrt(fan_in), 1/sqrt(fan_in)).
    Weights are stored as [in_features, out_features] (transposed vs PyTorch)."""
    def linear(k, fan_in, fan_out):
        kw, kb = jax.random.split(k)
        bound = 1.0 / jnp.sqrt(jnp.float32(fan_in))
        w = jax.random.uniform(kw, (fan_in, fan_out), jnp.float32, -bound, bound)
        b = jax.random.uniform(kb, (1, fan_out), jnp.float32, -bound, bound)
        return w, b

    k0, k1, k2 = jax.random.split(key, 3)
    w0, b0 = linear(k0, input_dim, hidden_dim)
    w1, b1 = linear(k1, hidden_dim, hidden_dim)
    w2, b2 = linear(k2, hidden_dim, num_classes)
    return (w0, b0, w1, b1, w2, b2)


def mlp_reference(x, params):
    """Pure-f32 JAX reference (eval-mode dropout = identity)."""
    w0, b0, w1, b1, w2, b2 = params
    h0 = jnp.maximum(x.astype(jnp.float32) @ w0 + b0, 0.0)
    h1 = jnp.maximum(h0 @ w1 + b1, 0.0)
    return h1 @ w2 + b2


if __name__ == "__main__":
    # Small, forward-consistent shapes: batch=64, input_dim=32, hidden_dim=16
    # (module default), num_classes=8.
    B, INPUT_DIM, HIDDEN_DIM, NUM_CLASSES = 64, 32, 16, 8

    key = jax.random.PRNGKey(0)
    kx, kp = jax.random.split(key)
    x = jax.random.normal(kx, (B, INPUT_DIM), jnp.float32)
    params = init_params(kp, INPUT_DIM, HIDDEN_DIM, NUM_CLASSES)

    # One-time padding + bf16 cast of the weights (hoisted out of the forward).
    padded_params, dims = prepare_params(params)
    padded_params = jax.block_until_ready(padded_params)

    out = mlp_forward(x, padded_params, dims=dims)   # fused, lane-dense, bf16 MXU
    out = jax.block_until_ready(out)

    ref = mlp_reference(x, params)
    assert out.shape == (B, NUM_CLASSES)
    # bf16 MXU operands (f32 accumulation) -> small drift vs the pure-f32
    # reference at these K sizes; re-validate tolerance at production dims.
    assert jnp.allclose(out, ref, atol=5e-2, rtol=5e-2), "mismatch vs JAX reference"

    print("KERNEL_OK")
</pallas_src>

<mosaic_0001>
module attributes {stable_mosaic.version = 11 : i64} {
  func.func @mlp_kernel(%arg0: i32, %arg1: memref<64x128xbf16, #tpu.memory_space<vmem>>, %arg2: memref<128x128xbf16, #tpu.memory_space<vmem>>, %arg3: memref<1x128xf32, #tpu.memory_space<vmem>>, %arg4: memref<128x128xbf16, #tpu.memory_space<vmem>>, %arg5: memref<1x128xf32, #tpu.memory_space<vmem>>, %arg6: memref<128x128xbf16, #tpu.memory_space<vmem>>, %arg7: memref<1x128xf32, #tpu.memory_space<vmem>>, %arg8: memref<64x128xf32, #tpu.memory_space<vmem>>) attributes {dimension_semantics = [#tpu.dimension_semantics<parallel>], iteration_bounds = array<i64: 1>, scalar_prefetch = 0 : i64, scratch_operands = 0 : i64, tpu.core_type = #tpu.core_type<tc>, window_params = [{transform_indices = @transform_0, window_bounds = array<i64: 64, 128>}, {pipeline_mode = #tpu.pipeline_mode<synchronous>, transform_indices = @transform_1, window_bounds = array<i64: 128, 128>}, {pipeline_mode = #tpu.pipeline_mode<synchronous>, transform_indices = @transform_2, window_bounds = array<i64: 1, 128>}, {pipeline_mode = #tpu.pipeline_mode<synchronous>, transform_indices = @transform_3, window_bounds = array<i64: 128, 128>}, {pipeline_mode = #tpu.pipeline_mode<synchronous>, transform_indices = @transform_4, window_bounds = array<i64: 1, 128>}, {pipeline_mode = #tpu.pipeline_mode<synchronous>, transform_indices = @transform_5, window_bounds = array<i64: 128, 128>}, {pipeline_mode = #tpu.pipeline_mode<synchronous>, transform_indices = @transform_6, window_bounds = array<i64: 1, 128>}, {transform_indices = @transform_7, window_bounds = array<i64: 64, 128>}]} {
    %c0 = arith.constant 0 : index
    %c0_0 = arith.constant 0 : index
    %0 = vector.load %arg1[%c0, %c0_0] : memref<64x128xbf16, #tpu.memory_space<vmem>>, vector<64x128xbf16>
    %c0_1 = arith.constant 0 : index
    %c0_2 = arith.constant 0 : index
    %1 = vector.load %arg2[%c0_1, %c0_2] : memref<128x128xbf16, #tpu.memory_space<vmem>>, vector<128x128xbf16>
    %cst = arith.constant dense<0.000000e+00> : vector<64x128xf32>
    %2 = tpu.matmul %0, %1, %cst {dimension_numbers = #tpu.dot_dimension_numbers<[1], [0], [0], [1], [0, 0, 1, 1], [], []>} : vector<64x128xbf16>, vector<128x128xbf16>, vector<64x128xf32> -> vector<64x128xf32>
    %c0_3 = arith.constant 0 : index
    %c0_4 = arith.constant 0 : index
    %3 = vector.load %arg3[%c0_3, %c0_4] : memref<1x128xf32, #tpu.memory_space<vmem>>, vector<1x128xf32>
    %4 = vector.broadcast %3 : vector<1x128xf32> to vector<64x128xf32>
    %5 = arith.addf %2, %4 : vector<64x128xf32>
    %cst_5 = arith.constant 0.000000e+00 : f32
    %6 = vector.broadcast %cst_5 : f32 to vector<64x128xf32>
    %7 = arith.maximumf %5, %6 : vector<64x128xf32>
    %8 = arith.truncf %7 : vector<64x128xf32> to vector<64x128xbf16>
    %c0_6 = arith.constant 0 : index
    %c0_7 = arith.constant 0 : index
    %9 = vector.load %arg4[%c0_6, %c0_7] : memref<128x128xbf16, #tpu.memory_space<vmem>>, vector<128x128xbf16>
    %cst_8 = arith.constant dense<0.000000e+00> : vector<64x128xf32>
    %10 = tpu.matmul %8, %9, %cst_8 {dimension_numbers = #tpu.dot_dimension_numbers<[1], [0], [0], [1], [0, 0, 1, 1], [], []>} : vector<64x128xbf16>, vector<128x128xbf16>, vector<64x128xf32> -> vector<64x128xf32>
    %c0_9 = arith.constant 0 : index
    %c0_10 = arith.constant 0 : index
    %11 = vector.load %arg5[%c0_9, %c0_10] : memref<1x128xf32, #tpu.memory_space<vmem>>, vector<1x128xf32>
    %12 = vector.broadcast %11 : vector<1x128xf32> to vector<64x128xf32>
    %13 = arith.addf %10, %12 : vector<64x128xf32>
    %cst_11 = arith.constant 0.000000e+00 : f32
    %14 = vector.broadcast %cst_11 : f32 to vector<64x128xf32>
    %15 = arith.maximumf %13, %14 : vector<64x128xf32>
    %16 = arith.truncf %15 : vector<64x128xf32> to vector<64x128xbf16>
    %c0_12 = arith.constant 0 : index
    %c0_13 = arith.constant 0 : index
    %17 = vector.load %arg6[%c0_12, %c0_13] : memref<128x128xbf16, #tpu.memory_space<vmem>>, vector<128x128xbf16>
    %cst_14 = arith.constant dense<0.000000e+00> : vector<64x128xf32>
    %18 = tpu.matmul %16, %17, %cst_14 {dimension_numbers = #tpu.dot_dimension_numbers<[1], [0], [0], [1], [0, 0, 1, 1], [], []>} : vector<64x128xbf16>, vector<128x128xbf16>, vector<64x128xf32> -> vector<64x128xf32>
    %c0_15 = arith.constant 0 : index
    %c0_16 = arith.constant 0 : index
    %19 = vector.load %arg7[%c0_15, %c0_16] : memref<1x128xf32, #tpu.memory_space<vmem>>, vector<1x128xf32>
    %20 = vector.broadcast %19 : vector<1x128xf32> to vector<64x128xf32>
    %21 = arith.addf %18, %20 : vector<64x128xf32>
    %c0_17 = arith.constant 0 : index
    %c0_18 = arith.constant 0 : index
    %22 = vector.load %arg8[%c0_17, %c0_18] : memref<64x128xf32, #tpu.memory_space<vmem>>, vector<64x128xf32>
    tpu.vector_store %arg8[%c0_17, %c0_18], %21 {strides = array<i32>} : memref<64x128xf32, #tpu.memory_space<vmem>>, vector<64x128xf32>,
    return
  }
  func.func @transform_0(%arg0: i32) -> (i32, i32) {
    %c0_i32 = arith.constant 0 : i32
    %c0_i32_0 = arith.constant 0 : i32
    return %arg0, %c0_i32 : i32, i32
  }
  func.func @transform_1(%arg0: i32) -> (i32, i32) {
    %c0_i32 = arith.constant 0 : i32
    %c0_i32_0 = arith.constant 0 : i32
    %c0_i32_1 = arith.constant 0 : i32
    return %c0_i32, %c0_i32_0 : i32, i32
  }
  func.func @transform_2(%arg0: i32) -> (i32, i32) {
    %c0_i32 = arith.constant 0 : i32
    %c0_i32_0 = arith.constant 0 : i32
    %c0_i32_1 = arith.constant 0 : i32
    return %c0_i32, %c0_i32_0 : i32, i32
  }
  func.func @transform_3(%arg0: i32) -> (i32, i32) {
    %c0_i32 = arith.constant 0 : i32
    %c0_i32_0 = arith.constant 0 : i32
    %c0_i32_1 = arith.constant 0 : i32
    return %c0_i32, %c0_i32_0 : i32, i32
  }
  func.func @transform_4(%arg0: i32) -> (i32, i32) {
    %c0_i32 = arith.constant 0 : i32
    %c0_i32_0 = arith.constant 0 : i32
    %c0_i32_1 = arith.constant 0 : i32
    return %c0_i32, %c0_i32_0 : i32, i32
  }
  func.func @transform_5(%arg0: i32) -> (i32, i32) {
    %c0_i32 = arith.constant 0 : i32
    %c0_i32_0 = arith.constant 0 : i32
    %c0_i32_1 = arith.constant 0 : i32
    return %c0_i32, %c0_i32_0 : i32, i32
  }
  func.func @transform_6(%arg0: i32) -> (i32, i32) {
    %c0_i32 = arith.constant 0 : i32
    %c0_i32_0 = arith.constant 0 : i32
    %c0_i32_1 = arith.constant 0 : i32
    return %c0_i32, %c0_i32_0 : i32, i32
  }
  func.func @transform_7(%arg0: i32) -> (i32, i32) {
    %c0_i32 = arith.constant 0 : i32
    %c0_i32_0 = arith.constant 0 : i32
    return %arg0, %c0_i32 : i32, i32
  }
}

</mosaic_0001>

<llo_original>
// kernel: mlp_forward.2
$region0: #{mlp_forward.2}
  #allocation0 [shape = 'u32[]', space=smem, size = 0x4, offset = 0x4, fixed_abs, tag = 'smem constant byte address 0x4 - core index']
  #allocation1 [shape = 'u32[144,128]{1,0:T(1,128)}', space=vmem, size = 0x12000, scoped, tag = 'internal scratch']
  #allocation2 [shape = 'u32[2048]{0}', space=vmem, size = 0x2000, scoped, tag = 'scoped memory for mlp_forward.2']
  #allocation3 [shape = 'u32[2048]{0}', space=vmem, size = 0x2000, scoped, tag = 'scoped memory for mlp_forward.2']
  #allocation4 [shape = 'u32[2048]{0}', space=vmem, size = 0x2000, scoped, tag = 'scoped memory for mlp_forward.2']
  #allocation5 [shape = 'u32[2048]{0}', space=vmem, size = 0x2000, scoped, tag = 'scoped memory for mlp_forward.2']
  #allocation6 [shape = 'u32[2048]{0}', space=vmem, size = 0x2000, scoped, tag = 'scoped memory for mlp_forward.2']
  %s0 = inlined_call_operand.vmem [shape: bf16[128,128], index: 0, kind: input, shape index: {}]
  %s1 = inlined_call_operand.vmem [shape: f32[1,128], index: 1, kind: input, shape index: {}]
  %s2 = inlined_call_operand.vmem [shape: bf16[128,128], index: 2, kind: input, shape index: {}]
  %s3 = inlined_call_operand.vmem [shape: f32[1,128], index: 3, kind: input, shape index: {}]
  %s4 = inlined_call_operand.hbm [shape: bf16[128,128], index: 4, kind: input, shape index: {}]
  %s5 = inlined_call_operand.vmem [shape: f32[1,128], index: 5, kind: input, shape index: {}]
  %s6 = inlined_call_operand.vmem [shape: bf16[64,32], index: 6, kind: input, shape index: {}]
  %s7 = inlined_call_operand.<no memory space> [shape: bf16[], index: 7, kind: input, shape index: {}]
  %s8 = inlined_call_operand.vmem [shape: f32[64,128], index: 8, kind: output, shape index: {}]
  %s9 = sld [smem:[#allocation0]]
  $region42: #{mlp_forward.2} parent=0
    _
  %s11 = ssub.s32 1, %s9
  %s12 = scalar_select 0, %s11, %s9
  %v13 = vstv %s7
  %v14 = vunpack.i.l.bf16 %v13
  %v16 = vunpack.i.h.bf16 %v13
  $region1: #{mlp_forward.2} parent=0
    #allocation7 [shape = 'u8[32768]{0}', space=vmem, size = 0x8000, scoped, tag = 'input window, operand 5, single buffered']
    #allocation8 [shape = 's32[1]{0}', space=sflag, size = 0x4, scoped, tag = 'scoped memory for mlp_forward.2']
    #allocation9 [shape = 'u8[16384]{0}', space=vmem, size = 0x4000, dematerialized = true, scoped, tag = 'FusionAdapter Buffer %fusion.1 = bf16[64,128]{1,0:T(8,128)(2,1)} fusion(%param_6.1, %param_7), kind=kLoop, calls=%fused_computation.2.clone, metadata={op_name="jit(mlp_forward)/scatter" stack_frame_id=8}']
    %18 = vsyncpa [#allocation8], 0
    // Predicated region
    $region2: #{mlp_forward.2} parent=1 // pred_check
      _
    $region3: #{mlp_forward.2} parent=1 // pred_check_branch
      %20 = sbr.rel (0) target = $region5
    $region4: #{mlp_forward.2} parent=1 // pred_region
      _
    $region5: #{mlp_forward.2} parent=1 // pred_fallthru
      _
    // Predicated region
    $region6: #{mlp_forward.2} parent=1 // pred_check
      _
    $region7: #{mlp_forward.2} parent=1 // pred_check_branch
      %22 = sbr.rel (0) target = $region9
    $region8: #{mlp_forward.2} parent=1 // pred_region
      _
    $region9: #{mlp_forward.2} parent=1 // pred_fallthru
      _
    // Predicated region
    $region10: #{mlp_forward.2} parent=1 // pred_check
      _
    $region11: #{mlp_forward.2} parent=1 // pred_check_branch
      %24 = sbr.rel (0) target = $region13
    $region12: #{mlp_forward.2} parent=1 // pred_region
      _
    $region13: #{mlp_forward.2} parent=1 // pred_fallthru
      _
    // Predicated region
    $region14: #{mlp_forward.2} parent=1 // pred_check
      _
    $region15: #{mlp_forward.2} parent=1 // pred_check_branch
      %26 = sbr.rel (0) target = $region17
    $region16: #{mlp_forward.2} parent=1 // pred_region
      _
    $region17: #{mlp_forward.2} parent=1 // pred_fallthru
      _
    // Predicated region
    $region18: #{mlp_forward.2} parent=1 // pred_check
      _
    $region19: #{mlp_forward.2} parent=1 // pred_check_branch
      %28 = sbr.rel (0) target = $region21
    $region20: #{mlp_forward.2} parent=1 // pred_region
      _
    $region21: #{mlp_forward.2} parent=1 // pred_fallthru
      _
    // Predicated region
    $region22: #{mlp_forward.2} parent=1 // pred_check
      _
    $region23: #{mlp_forward.2} parent=1 // pred_check_branch
      %30 = sbr.rel (0) target = $region25
    $region24: #{mlp_forward.2} parent=1 // pred_region
      %s32 = ssub.s32 1024, 1024
      %33 = vsyncadd [#allocation8], %s32
      %s34 = sshll.u32 [#allocation7], 4
      %s35 = int_to_ptr.vmem [resolvable:$true] %s34
      %40 = dma.hbm_to_vmem [thread:$0]  %s4, 1024, %s35, [#allocation8], 64, 64, 4
    $region25: #{mlp_forward.2} parent=1 // pred_fallthru
      _
    // Predicated region
    $region26: #{mlp_forward.2} parent=1 // pred_check
      _
    $region27: #{mlp_forward.2} parent=1 // pred_check_branch
      %42 = sbr.rel (0) target = $region29
    $region28: #{mlp_forward.2} parent=1 // pred_region
      _
    $region29: #{mlp_forward.2} parent=1 // pred_fallthru
      _
    // Predicated region
    $region30: #{mlp_forward.2} parent=1 // pred_check
      _
    $region31: #{mlp_forward.2} parent=1 // pred_check_branch
      %44 = sbr.rel (0) target = $region33
    $region32: #{mlp_forward.2} parent=1 // pred_region
      %45 = dma.done [#allocation8], 1024
    $region33: #{mlp_forward.2} parent=1 // pred_fallthru
      _
    %s47 = sor.u32 255, 127
    %s48 = sand.u32 %s47, 85
    %s49 = sshrl.u32 %s48, 1
    %s50 = sor.u32 %s48, %s49
    %s51 = sand.u32 51, %s50
    %s52 = sshrl.u32 %s51, 2
    %s53 = sor.u32 %s51, %s52
    %s54 = sand.u32 15, %s53
    %v55 = vld [vmem:[%s6] sm:%s54]
    %v56 = vunpack.c.l.bf16 %v55
    %v57 = vunpack.c.h.bf16 %v55
    %v58 = vlaneseq
    %v59 = vand.u32 %v58, 127
    %vm61 = vcmp.lt.s32.totalorder %v59, 32
    %v62 = vsel %vm61, %v56, %v14
    %v63 = vpack.c.bf16 0.0, %v62
    %65 = vst [vmem:[#allocation9] sm:$0xf] %v63
    %s66 = scalar_lea.vmem %s6, 4
    %s68 = sor.u32 255, 127
    %s69 = sand.u32 %s68, 85
    %s70 = sshrl.u32 %s69, 1
    %s71 = sor.u32 %s69, %s70
    %s72 = sand.u32 51, %s71
    %s73 = sshrl.u32 %s72, 2
    %s74 = sor.u32 %s72, %s73
    %s75 = sand.u32 15, %s74
    %v76 = vld [vmem:[%s66] sm:%s75]
    %v77 = vunpack.c.l.bf16 %v76
    %v78 = vunpack.c.h.bf16 %v76
    %v79 = vlaneseq
    %v80 = vand.u32 %v79, 127
    %vm82 = vcmp.lt.s32.totalorder %v80, 32
    %v83 = vsel %vm82, %v77, %v14
    %s84 = scalar_lea.vmem [#allocation9], 4
    %v85 = vpack.c.bf16 0.0, %v83
    %87 = vst [vmem:[%s84] sm:$0xf] %v85
    %s88 = scalar_lea.vmem %s6, 8
    %s90 = sor.u32 255, 127
    %s91 = sand.u32 %s90, 85
    %s92 = sshrl.u32 %s91, 1
    %s93 = sor.u32 %s91, %s92
    %s94 = sand.u32 51, %s93
    %s95 = sshrl.u32 %s94, 2
    %s96 = sor.u32 %s94, %s95
    %s97 = sand.u32 15, %s96
    %v98 = vld [vmem:[%s88] sm:%s97]
    %v99 = vunpack.c.l.bf16 %v98
    %v100 = vunpack.c.h.bf16 %v98
    %v101 = vlaneseq
    %v102 = vand.u32 %v101, 127
    %vm104 = vcmp.lt.s32.totalorder %v102, 32
    %v105 = vsel %vm104, %v99, %v14
    %s106 = scalar_lea.vmem [#allocation9], 8
    %v107 = vpack.c.bf16 0.0, %v105
    %109 = vst [vmem:[%s106] sm:$0xf] %v107
    %s110 = scalar_lea.vmem %s6, 12
    %s112 = sor.u32 255, 127
    %s113 = sand.u32 %s112, 85
    %s114 = sshrl.u32 %s113, 1
    %s115 = sor.u32 %s113, %s114
    %s116 = sand.u32 51, %s115
    %s117 = sshrl.u32 %s116, 2
    %s118 = sor.u32 %s116, %s117
    %s119 = sand.u32 15, %s118
    %v120 = vld [vmem:[%s110] sm:%s119]
    %v121 = vunpack.c.l.bf16 %v120
    %v122 = vunpack.c.h.bf16 %v120
    %v123 = vlaneseq
    %v124 = vand.u32 %v123, 127
    %vm126 = vcmp.lt.s32.totalorder %v124, 32
    %v127 = vsel %vm126, %v121, %v14
    %s128 = scalar_lea.vmem [#allocation9], 12
    %v129 = vpack.c.bf16 0.0, %v127
    %131 = vst [vmem:[%s128] sm:$0xf] %v129
    %s132 = scalar_lea.vmem %s6, 16
    %s134 = sor.u32 255, 127
    %s135 = sand.u32 %s134, 85
    %s136 = sshrl.u32 %s135, 1
    %s137 = sor.u32 %s135, %s136
    %s138 = sand.u32 51, %s137
    %s139 = sshrl.u32 %s138, 2
    %s140 = sor.u32 %s138, %s139
    %s141 = sand.u32 15, %s140
    %v142 = vld [vmem:[%s132] sm:%s141]
    %v143 = vunpack.c.l.bf16 %v142
    %v144 = vunpack.c.h.bf16 %v142
    %v145 = vlaneseq
    %v146 = vand.u32 %v145, 127
    %vm148 = vcmp.lt.s32.totalorder %v146, 32
    %v149 = vsel %vm148, %v143, %v14
    %s150 = scalar_lea.vmem [#allocation9], 16
    %v151 = vpack.c.bf16 0.0, %v149
    %153 = vst [vmem:[%s150] sm:$0xf] %v151
    %s154 = scalar_lea.vmem %s6, 20
    %s156 = sor.u32 255, 127
    %s157 = sand.u32 %s156, 85
    %s158 = sshrl.u32 %s157, 1
    %s159 = sor.u32 %s157, %s158
    %s160 = sand.u32 51, %s159
    %s161 = sshrl.u32 %s160, 2
    %s162 = sor.u32 %s160, %s161
    %s163 = sand.u32 15, %s162
    %v164 = vld [vmem:[%s154] sm:%s163]
    %v165 = vunpack.c.l.bf16 %v164
    %v166 = vunpack.c.h.bf16 %v164
    %v167 = vlaneseq
    %v168 = vand.u32 %v167, 127
    %vm170 = vcmp.lt.s32.totalorder %v168, 32
    %v171 = vsel %vm170, %v165, %v14
    %s172 = scalar_lea.vmem [#allocation9], 20
    %v173 = vpack.c.bf16 0.0, %v171
    %175 = vst [vmem:[%s172] sm:$0xf] %v173
    %s176 = scalar_lea.vmem %s6, 24
    %s178 = sor.u32 255, 127
    %s179 = sand.u32 %s178, 85
    %s180 = sshrl.u32 %s179, 1
    %s181 = sor.u32 %s179, %s180
    %s182 = sand.u32 51, %s181
    %s183 = sshrl.u32 %s182, 2
    %s184 = sor.u32 %s182, %s183
    %s185 = sand.u32 15, %s184
    %v186 = vld [vmem:[%s176] sm:%s185]
    %v187 = vunpack.c.l.bf16 %v186
    %v188 = vunpack.c.h.bf16 %v186
    %v189 = vlaneseq
    %v190 = vand.u32 %v189, 127
    %vm192 = vcmp.lt.s32.totalorder %v190, 32
    %v193 = vsel %vm192, %v187, %v14
    %s194 = scalar_lea.vmem [#allocation9], 24
    %v195 = vpack.c.bf16 0.0, %v193
    %197 = vst [vmem:[%s194] sm:$0xf] %v195
    %s198 = scalar_lea.vmem %s6, 28
    %s200 = sor.u32 255, 127
    %s201 = sand.u32 %s200, 85
    %s202 = sshrl.u32 %s201, 1
    %s203 = sor.u32 %s201, %s202
    %s204 = sand.u32 51, %s203
    %s205 = sshrl.u32 %s204, 2
    %s206 = sor.u32 %s204, %s205
    %s207 = sand.u32 15, %s206
    %v208 = vld [vmem:[%s198] sm:%s207]
    %v209 = vunpack.c.l.bf16 %v208
    %v210 = vunpack.c.h.bf16 %v208
    %v211 = vlaneseq
    %v212 = vand.u32 %v211, 127
    %vm214 = vcmp.lt.s32.totalorder %v212, 32
    %v215 = vsel %vm214, %v209, %v14
    %s216 = scalar_lea.vmem [#allocation9], 28
    %v217 = vpack.c.bf16 0.0, %v215
    %219 = vst [vmem:[%s216] sm:$0xf] %v217
    %v221 = vld [vmem:[#allocation9] sm:$0xf]
    %v222 = vld [vmem:[#allocation9 + $0x4] sm:$0xf]
    %v223 = vld [vmem:[#allocation9 + $0x8] sm:$0xf]
    %v224 = vld [vmem:[#allocation9 + $0xc] sm:$0xf]
    %v225 = vld [vmem:[#allocation9 + $0x10] sm:$0xf]
    %v226 = vld [vmem:[#allocation9 + $0x14] sm:$0xf]
    %v227 = vld [vmem:[#allocation9 + $0x18] sm:$0xf]
    %v228 = vld [vmem:[#allocation9 + $0x1c] sm:$0xf]
    %v229 = vld [vmem:[%s0] sm:$0xf]
    %v230 = vld [vmem:[%s0 + $0x4] sm:$0xf]
    %v231 = vld [vmem:[%s0 + $0x8] sm:$0xf]
    %v232 = vld [vmem:[%s0 + $0xc] sm:$0xf]
    %v233 = vld [vmem:[%s0 + $0x10] sm:$0xf]
    %v234 = vld [vmem:[%s0 + $0x14] sm:$0xf]
    %v235 = vld [vmem:[%s0 + $0x18] sm:$0xf]
    %v236 = vld [vmem:[%s0 + $0x1c] sm:$0xf]
    %v237 = vld [vmem:[%s0 + $0x20] sm:$0xf]
    %v238 = vld [vmem:[%s0 + $0x24] sm:$0xf]
    %v239 = vld [vmem:[%s0 + $0x28] sm:$0xf]
    %v240 = vld [vmem:[%s0 + $0x2c] sm:$0xf]
    %v241 = vld [vmem:[%s0 + $0x30] sm:$0xf]
    %v242 = vld [vmem:[%s0 + $0x34] sm:$0xf]
    %v243 = vld [vmem:[%s0 + $0x38] sm:$0xf]
    %v244 = vld [vmem:[%s0 + $0x3c] sm:$0xf]
    %v245 = vld [vmem:[%s1] sm:$0x1]
    %v247 = vlaneseq
    %v248 = vshrl.u32 %v247, 7
    %v249 = vsub.s32 0, %v248
    %v250 = vrot.slane %v245, %v249
    %v260 = vunpack.c.l.b16 %v221
    %v261 = vunpack.c.l.b16 %v222
    %v262 = vunpack.c.l.b16 %v223
    %v263 = vunpack.c.l.b16 %v224
    %v264 = vunpack.c.l.b16 %v225
    %v265 = vunpack.c.l.b16 %v226
    %v266 = vunpack.c.l.b16 %v227
    %v267 = vunpack.c.l.b16 %v228
    %v268 = vpack.c.b16 %v261, %v260
    %v269 = vpack.c.b16 %v263, %v262
    %v270 = vpack.c.b16 %v265, %v264
    %v271 = vpack.c.b16 %v267, %v266
    %v292 = vunpack.c.l.b16 %v229
    %v293 = vunpack.c.l.b16 %v230
    %v294 = vunpack.c.l.b16 %v231
    %v295 = vunpack.c.l.b16 %v232
    %v296 = vunpack.c.l.b16 %v233
    %v297 = vunpack.c.l.b16 %v234
    %v298 = vunpack.c.l.b16 %v235
    %v299 = vunpack.c.l.b16 %v236
    %v300 = vunpack.c.l.b16 %v237
    %v301 = vunpack.c.l.b16 %v238
    %v302 = vunpack.c.l.b16 %v239
    %v303 = vunpack.c.l.b16 %v240
    %v304 = vunpack.c.l.b16 %v241
    %v305 = vunpack.c.l.b16 %v242
    %v306 = vunpack.c.l.b16 %v243
    %v307 = vunpack.c.l.b16 %v244
    %v308 = vpack.c.b16 %v293, %v292
    %v309 = vpack.c.b16 %v295, %v294
    %v310 = vpack.c.b16 %v297, %v296
    %v311 = vpack.c.b16 %v299, %v298
    %v312 = vpack.c.b16 %v301, %v300
    %v313 = vpack.c.b16 %v303, %v302
    %v314 = vpack.c.b16 %v305, %v304
    %v315 = vpack.c.b16 %v307, %v306
    %324 = vmatprep.subr.bf16.mxu0 0
    %325 = vmatpush1.bf16.msra.mxu0 %v308
    %326 = vmatprep.subr.bf16.mxu0 0
    %327 = vmatpush1.bf16.msra.mxu0 %v309
    %328 = vmatprep.subr.bf16.mxu0 0
    %329 = vmatpush1.bf16.msra.mxu0 %v310
    %330 = vmatprep.subr.bf16.mxu0 0
    %331 = vmatpush1.bf16.msra.mxu0 %v311
    %332 = vmatprep.subr.bf16.mxu0 0
    %333 = vmatpush1.bf16.msra.mxu0 %v312
    %334 = vmatprep.subr.bf16.mxu0 0
    %335 = vmatpush1.bf16.msra.mxu0 %v313
    %336 = vmatprep.subr.bf16.mxu0 0
    %337 = vmatpush1.bf16.msra.mxu0 %v314
    %338 = vmatprep.subr.bf16.mxu0 0
    %339 = vmatpush1.bf16.msra.mxu0 %v315
    %340 = vmatprep.subr.bf16.mxu0 0
    %341 = vmatpush1.bf16.msra.mxu0 0
    %342 = vmatprep.subr.bf16.mxu0 0
    %343 = vmatpush1.bf16.msra.mxu0 0
    %344 = vmatprep.subr.bf16.mxu0 0
    %345 = vmatpush1.bf16.msra.mxu0 0
    %346 = vmatprep.subr.bf16.mxu0 0
    %347 = vmatpush1.bf16.msra.mxu0 0
    %348 = vmatprep.subr.bf16.mxu0 0
    %349 = vmatpush1.bf16.msra.mxu0 0
    %350 = vmatprep.subr.bf16.mxu0 0
    %351 = vmatpush1.bf16.msra.mxu0 0
    %352 = vmatprep.subr.bf16.mxu0 0
    %353 = vmatpush1.bf16.msra.mxu0 0
    %354 = vmatprep.subr.bf16.mxu0 0
    %355 = vmatpush1.bf16.msra.mxu0 0
    %356 = vmatprep.mubr.bf16.mxu0 0
    %357 = vmatmul.mubr.bf16.gmra.mrb[0].mxu0 %v268
    %v358 = vpop.f32.mrb[0].mxu0
    %v359 = vadd.f32 %v250, %v358
    %v360 = vpop.f32.mrb[0].mxu0
    %v361 = vpop.f32.mrb[0].mxu0
    %v362 = vadd.f32 %v250, %v361
    %v363 = vpop.f32.mrb[0].mxu0
    %364 = vmatprep.mubr.bf16.mxu0 0
    %365 = vmatmul.mubr.bf16.gmra.mrb[0].mxu0 %v269
    %v366 = vpop.f32.mrb[0].mxu0
    %v367 = vadd.f32 %v250, %v366
    %v368 = vpop.f32.mrb[0].mxu0
    %v369 = vpop.f32.mrb[0].mxu0
    %v370 = vadd.f32 %v250, %v369
    %v371 = vpop.f32.mrb[0].mxu0
    %372 = vmatprep.mubr.bf16.mxu0 0
    %373 = vmatmul.mubr.bf16.gmra.mrb[0].mxu0 %v270
    %v374 = vpop.f32.mrb[0].mxu0
    %v375 = vadd.f32 %v250, %v374
    %v376 = vpop.f32.mrb[0].mxu0
    %v377 = vpop.f32.mrb[0].mxu0
    %v378 = vadd.f32 %v250, %v377
    %v379 = vpop.f32.mrb[0].mxu0
    %380 = vmatprep.mubr.bf16.mxu0 0
    %381 = vmatmul.mubr.bf16.gmra.mrb[0].mxu0 %v271
    %v382 = vpop.f32.mrb[0].mxu0
    %v383 = vadd.f32 %v250, %v382
    %v384 = vpop.f32.mrb[0].mxu0
    %v385 = vpop.f32.mrb[0].mxu0
    %v386 = vadd.f32 %v250, %v385
    %v387 = vpop.f32.mrb[0].mxu0
    %388 = vdwg.mxu0
    %v389 = vmax.f32 %v359, 0.0
    %v390 = vmax.f32 %v362, 0.0
    %v391 = vmax.f32 %v367, 0.0
    %v392 = vmax.f32 %v370, 0.0
    %v393 = vmax.f32 %v375, 0.0
    %v394 = vmax.f32 %v378, 0.0
    %v395 = vmax.f32 %v383, 0.0
    %v396 = vmax.f32 %v386, 0.0
    %v397 = vpack.c.bf16 %v390, %v389
    %v398 = vpack.c.bf16 %v392, %v391
    %v399 = vpack.c.bf16 %v394, %v393
    %v400 = vpack.c.bf16 %v396, %v395
    %v401 = vld [vmem:[%s2] sm:$0xf]
    %v402 = vld [vmem:[%s2 + $0x4] sm:$0xf]
    %v403 = vld [vmem:[%s2 + $0x8] sm:$0xf]
    %v404 = vld [vmem:[%s2 + $0xc] sm:$0xf]
    %v405 = vld [vmem:[%s2 + $0x10] sm:$0xf]
    %v406 = vld [vmem:[%s2 + $0x14] sm:$0xf]
    %v407 = vld [vmem:[%s2 + $0x18] sm:$0xf]
    %v408 = vld [vmem:[%s2 + $0x1c] sm:$0xf]
    %v409 = vld [vmem:[%s2 + $0x20] sm:$0xf]
    %v410 = vld [vmem:[%s2 + $0x24] sm:$0xf]
    %v411 = vld [vmem:[%s2 + $0x28] sm:$0xf]
    %v412 = vld [vmem:[%s2 + $0x2c] sm:$0xf]
    %v413 = vld [vmem:[%s2 + $0x30] sm:$0xf]
    %v414 = vld [vmem:[%s2 + $0x34] sm:$0xf]
    %v415 = vld [vmem:[%s2 + $0x38] sm:$0xf]
    %v416 = vld [vmem:[%s2 + $0x3c] sm:$0xf]
    %v417 = vld [vmem:[%s3] sm:$0x1]
    %v419 = vlaneseq
    %v420 = vshrl.u32 %v419, 7
    %v421 = vsub.s32 0, %v420
    %v422 = vrot.slane %v417, %v421
    %v440 = vunpack.c.l.b16 %v401
    %v441 = vunpack.c.l.b16 %v402
    %v442 = vunpack.c.l.b16 %v403
    %v443 = vunpack.c.l.b16 %v404
    %v444 = vunpack.c.l.b16 %v405
    %v445 = vunpack.c.l.b16 %v406
    %v446 = vunpack.c.l.b16 %v407
    %v447 = vunpack.c.l.b16 %v408
    %v448 = vunpack.c.l.b16 %v409
    %v449 = vunpack.c.l.b16 %v410
    %v450 = vunpack.c.l.b16 %v411
    %v451 = vunpack.c.l.b16 %v412
    %v452 = vunpack.c.l.b16 %v413
    %v453 = vunpack.c.l.b16 %v414
    %v454 = vunpack.c.l.b16 %v415
    %v455 = vunpack.c.l.b16 %v416
    %v456 = vpack.c.b16 %v441, %v440
    %v457 = vpack.c.b16 %v443, %v442
    %v458 = vpack.c.b16 %v445, %v444
    %v459 = vpack.c.b16 %v447, %v446
    %v460 = vpack.c.b16 %v449, %v448
    %v461 = vpack.c.b16 %v451, %v450
    %v462 = vpack.c.b16 %v453, %v452
    %v463 = vpack.c.b16 %v455, %v454
    %472 = vmatprep.subr.bf16.mxu0 0
    %473 = vmatpush1.bf16.msra.mxu0 %v456
    %474 = vmatprep.subr.bf16.mxu0 0
    %475 = vmatpush1.bf16.msra.mxu0 %v457
    %476 = vmatprep.subr.bf16.mxu0 0
    %477 = vmatpush1.bf16.msra.mxu0 %v458
    %478 = vmatprep.subr.bf16.mxu0 0
    %479 = vmatpush1.bf16.msra.mxu0 %v459
    %480 = vmatprep.subr.bf16.mxu0 0
    %481 = vmatpush1.bf16.msra.mxu0 %v460
    %482 = vmatprep.subr.bf16.mxu0 0
    %483 = vmatpush1.bf16.msra.mxu0 %v461
    %484 = vmatprep.subr.bf16.mxu0 0
    %485 = vmatpush1.bf16.msra.mxu0 %v462
    %486 = vmatprep.subr.bf16.mxu0 0
    %487 = vmatpush1.bf16.msra.mxu0 %v463
    %488 = vmatprep.subr.bf16.mxu0 0
    %489 = vmatpush1.bf16.msra.mxu0 0
    %490 = vmatprep.subr.bf16.mxu0 0
    %491 = vmatpush1.bf16.msra.mxu0 0
    %492 = vmatprep.subr.bf16.mxu0 0
    %493 = vmatpush1.bf16.msra.mxu0 0
    %494 = vmatprep.subr.bf16.mxu0 0
    %495 = vmatpush1.bf16.msra.mxu0 0
    %496 = vmatprep.subr.bf16.mxu0 0
    %497 = vmatpush1.bf16.msra.mxu0 0
    %498 = vmatprep.subr.bf16.mxu0 0
    %499 = vmatpush1.bf16.msra.mxu0 0
    %500 = vmatprep.subr.bf16.mxu0 0
    %501 = vmatpush1.bf16.msra.mxu0 0
    %502 = vmatprep.subr.bf16.mxu0 0
    %503 = vmatpush1.bf16.msra.mxu0 0
    %504 = vmatprep.mubr.bf16.mxu0 0
    %505 = vmatmul.mubr.bf16.gmra.mrb[0].mxu0 %v397
    %v506 = vpop.f32.mrb[0].mxu0
    %v507 = vadd.f32 %v422, %v506
    %v508 = vpop.f32.mrb[0].mxu0
    %v509 = vpop.f32.mrb[0].mxu0
    %v510 = vadd.f32 %v422, %v509
    %v511 = vpop.f32.mrb[0].mxu0
    %512 = vmatprep.mubr.bf16.mxu0 0
    %513 = vmatmul.mubr.bf16.gmra.mrb[0].mxu0 %v398
    %v514 = vpop.f32.mrb[0].mxu0
    %v515 = vadd.f32 %v422, %v514
    %v516 = vpop.f32.mrb[0].mxu0
    %v517 = vpop.f32.mrb[0].mxu0
    %v518 = vadd.f32 %v422, %v517
    %v519 = vpop.f32.mrb[0].mxu0
    %520 = vmatprep.mubr.bf16.mxu0 0
    %521 = vmatmul.mubr.bf16.gmra.mrb[0].mxu0 %v399
    %v522 = vpop.f32.mrb[0].mxu0
    %v523 = vadd.f32 %v422, %v522
    %v524 = vpop.f32.mrb[0].mxu0
    %v525 = vpop.f32.mrb[0].mxu0
    %v526 = vadd.f32 %v422, %v525
    %v527 = vpop.f32.mrb[0].mxu0
    %528 = vmatprep.mubr.bf16.mxu0 0
    %529 = vmatmul.mubr.bf16.gmra.mrb[0].mxu0 %v400
    %v530 = vpop.f32.mrb[0].mxu0
    %v531 = vadd.f32 %v422, %v530
    %v532 = vpop.f32.mrb[0].mxu0
    %v533 = vpop.f32.mrb[0].mxu0
    %v534 = vadd.f32 %v422, %v533
    %v535 = vpop.f32.mrb[0].mxu0
    %536 = vdwg.mxu0
    %v537 = vmax.f32 %v507, 0.0
    %v538 = vmax.f32 %v510, 0.0
    %v539 = vmax.f32 %v515, 0.0
    %v540 = vmax.f32 %v518, 0.0
    %v541 = vmax.f32 %v523, 0.0
    %v542 = vmax.f32 %v526, 0.0
    %v543 = vmax.f32 %v531, 0.0
    %v544 = vmax.f32 %v534, 0.0
    %v545 = vpack.c.bf16 %v538, %v537
    %v546 = vpack.c.bf16 %v540, %v539
    %v547 = vpack.c.bf16 %v542, %v541
    %v548 = vpack.c.bf16 %v544, %v543
    %v549 = vld [vmem:[#allocation7] sm:$0xf]
    %v550 = vld [vmem:[#allocation7 + $0x4] sm:$0xf]
    %v551 = vld [vmem:[#allocation7 + $0x8] sm:$0xf]
    %v552 = vld [vmem:[#allocation7 + $0xc] sm:$0xf]
    %v553 = vld [vmem:[#allocation7 + $0x10] sm:$0xf]
    %v554 = vld [vmem:[#allocation7 + $0x14] sm:$0xf]
    %v555 = vld [vmem:[#allocation7 + $0x18] sm:$0xf]
    %v556 = vld [vmem:[#allocation7 + $0x1c] sm:$0xf]
    %v557 = vld [vmem:[#allocation7 + $0x20] sm:$0xf]
    %v558 = vld [vmem:[#allocation7 + $0x24] sm:$0xf]
    %v559 = vld [vmem:[#allocation7 + $0x28] sm:$0xf]
    %v560 = vld [vmem:[#allocation7 + $0x2c] sm:$0xf]
    %v561 = vld [vmem:[#allocation7 + $0x30] sm:$0xf]
    %v562 = vld [vmem:[#allocation7 + $0x34] sm:$0xf]
    %v563 = vld [vmem:[#allocation7 + $0x38] sm:$0xf]
    %v564 = vld [vmem:[#allocation7 + $0x3c] sm:$0xf]
    %v565 = vld [vmem:[%s5] sm:$0x1]
    %v567 = vlaneseq
    %v568 = vshrl.u32 %v567, 7
    %v569 = vsub.s32 0, %v568
    %v570 = vrot.slane %v565, %v569
    %v588 = vunpack.c.l.b16 %v549
    %v589 = vunpack.c.l.b16 %v550
    %v590 = vunpack.c.l.b16 %v551
    %v591 = vunpack.c.l.b16 %v552
    %v592 = vunpack.c.l.b16 %v553
    %v593 = vunpack.c.l.b16 %v554
    %v594 = vunpack.c.l.b16 %v555
    %v595 = vunpack.c.l.b16 %v556
    %v596 = vunpack.c.l.b16 %v557
    %v597 = vunpack.c.l.b16 %v558
    %v598 = vunpack.c.l.b16 %v559
    %v599 = vunpack.c.l.b16 %v560
    %v600 = vunpack.c.l.b16 %v561
    %v601 = vunpack.c.l.b16 %v562
    %v602 = vunpack.c.l.b16 %v563
    %v603 = vunpack.c.l.b16 %v564
    %v604 = vpack.c.b16 %v589, %v588
    %v605 = vpack.c.b16 %v591, %v590
    %v606 = vpack.c.b16 %v593, %v592
    %v607 = vpack.c.b16 %v595, %v594
    %v608 = vpack.c.b16 %v597, %v596
    %v609 = vpack.c.b16 %v599, %v598
    %v610 = vpack.c.b16 %v601, %v600
    %v611 = vpack.c.b16 %v603, %v602
    %620 = vmatprep.subr.bf16.mxu0 0
    %621 = vmatpush1.bf16.msra.mxu0 %v604
    %622 = vmatprep.subr.bf16.mxu0 0
    %623 = vmatpush1.bf16.msra.mxu0 %v605
    %624 = vmatprep.subr.bf16.mxu0 0
    %625 = vmatpush1.bf16.msra.mxu0 %v606
    %626 = vmatprep.subr.bf16.mxu0 0
    %627 = vmatpush1.bf16.msra.mxu0 %v607
    %628 = vmatprep.subr.bf16.mxu0 0
    %629 = vmatpush1.bf16.msra.mxu0 %v608
    %630 = vmatprep.subr.bf16.mxu0 0
    %631 = vmatpush1.bf16.msra.mxu0 %v609
    %632 = vmatprep.subr.bf16.mxu0 0
    %633 = vmatpush1.bf16.msra.mxu0 %v610
    %634 = vmatprep.subr.bf16.mxu0 0
    %635 = vmatpush1.bf16.msra.mxu0 %v611
    %636 = vmatprep.subr.bf16.mxu0 0
    %637 = vmatpush1.bf16.msra.mxu0 0
    %638 = vmatprep.subr.bf16.mxu0 0
    %639 = vmatpush1.bf16.msra.mxu0 0
    %640 = vmatprep.subr.bf16.mxu0 0
    %641 = vmatpush1.bf16.msra.mxu0 0
    %642 = vmatprep.subr.bf16.mxu0 0
    %643 = vmatpush1.bf16.msra.mxu0 0
    %644 = vmatprep.subr.bf16.mxu0 0
    %645 = vmatpush1.bf16.msra.mxu0 0
    %646 = vmatprep.subr.bf16.mxu0 0
    %647 = vmatpush1.bf16.msra.mxu0 0
    %648 = vmatprep.subr.bf16.mxu0 0
    %649 = vmatpush1.bf16.msra.mxu0 0
    %650 = vmatprep.subr.bf16.mxu0 0
    %651 = vmatpush1.bf16.msra.mxu0 0
    %652 = vmatprep.mubr.bf16.mxu0 0
    %653 = vmatmul.mubr.bf16.gmra.mrb[0].mxu0 %v545
    %v654 = vpop.f32.mrb[0].mxu0
    %v655 = vadd.f32 %v570, %v654
    %v656 = vpop.f32.mrb[0].mxu0
    %v657 = vpop.f32.mrb[0].mxu0
    %v658 = vadd.f32 %v570, %v657
    %v659 = vpop.f32.mrb[0].mxu0
    %660 = vmatprep.mubr.bf16.mxu0 0
    %661 = vmatmul.mubr.bf16.gmra.mrb[0].mxu0 %v546
    %v662 = vpop.f32.mrb[0].mxu0
    %v663 = vadd.f32 %v570, %v662
    %v664 = vpop.f32.mrb[0].mxu0
    %v665 = vpop.f32.mrb[0].mxu0
    %v666 = vadd.f32 %v570, %v665
    %v667 = vpop.f32.mrb[0].mxu0
    %668 = vmatprep.mubr.bf16.mxu0 0
    %669 = vmatmul.mubr.bf16.gmra.mrb[0].mxu0 %v547
    %v670 = vpop.f32.mrb[0].mxu0
    %v671 = vadd.f32 %v570, %v670
    %v672 = vpop.f32.mrb[0].mxu0
    %v673 = vpop.f32.mrb[0].mxu0
    %v674 = vadd.f32 %v570, %v673
    %v675 = vpop.f32.mrb[0].mxu0
    %676 = vmatprep.mubr.bf16.mxu0 0
    %677 = vmatmul.mubr.bf16.gmra.mrb[0].mxu0 %v548
    %v678 = vpop.f32.mrb[0].mxu0
    %v679 = vadd.f32 %v570, %v678
    %v680 = vpop.f32.mrb[0].mxu0
    %v681 = vpop.f32.mrb[0].mxu0
    %v682 = vadd.f32 %v570, %v681
    %v683 = vpop.f32.mrb[0].mxu0
    %684 = vdwg.mxu0
    %685 = vst [vmem:[%s8] sm:$0xff] %v655
    %686 = vst [vmem:[%s8 + $0x8] sm:$0xff] %v658
    %687 = vst [vmem:[%s8 + $0x10] sm:$0xff] %v663
    %688 = vst [vmem:[%s8 + $0x18] sm:$0xff] %v666
    %689 = vst [vmem:[%s8 + $0x20] sm:$0xff] %v671
    %690 = vst [vmem:[%s8 + $0x28] sm:$0xff] %v674
    %691 = vst [vmem:[%s8 + $0x30] sm:$0xff] %v679
    %692 = vst [vmem:[%s8 + $0x38] sm:$0xff] %v682
    // Predicated region
    $region34: #{mlp_forward.2} parent=1 // pred_check
      _
    $region35: #{mlp_forward.2} parent=1 // pred_check_branch
      %694 = sbr.rel (0) target = $region37
    $region36: #{mlp_forward.2} parent=1 // pred_region
      _
    $region37: #{mlp_forward.2} parent=1 // pred_fallthru
      _
    // Predicated region
    $region38: #{mlp_forward.2} parent=1 // pred_check
      _
    $region39: #{mlp_forward.2} parent=1 // pred_check_branch
      %696 = sbr.rel (0) target = $region41
    $region40: #{mlp_forward.2} parent=1 // pred_region
      _
    $region41: #{mlp_forward.2} parent=1 // pred_fallthru
      _
    %697 = vsyncpa [#allocation8], 1

</llo_original>
